<compile_context>
chip_gen: v6e
topology: v6e:2x2x1
jax: 0.10.0
libtpu: 0.0.40
codegen_flags: <defaults>
</compile_context>

<pallas_src>
import jax
import jax.numpy as jnp
from jax.experimental import pallas as pl
from jax.experimental.pallas import tpu as pltpu

LANE = 128          # TPU vreg lane width
MAX_TILE_B = 512    # batch rows per grid step (weights ~50 KB, tile ~= 16 KB bf16 x + 256 KB f32 out)


def _round_up(n, m):
    return ((n + m - 1) // m) * m


def actor_kernel(x_ref, w1_ref, b1_ref, w2_ref, b2_ref,
                 w3_ref, b3_ref, w4_ref, b4_ref, out_ref):
    # bf16 operands -> MXU, f32 accumulation; activations / bias adds in f32.
    h = jnp.dot(x_ref[...], w1_ref[...],
                preferred_element_type=jnp.float32) + b1_ref[...]
    h = jnp.maximum(h, 0.0)
    h = jnp.dot(h.astype(w2_ref.dtype), w2_ref[...],
                preferred_element_type=jnp.float32) + b2_ref[...]
    h = jnp.maximum(h, 0.0)
    h = jnp.dot(h.astype(w3_ref.dtype), w3_ref[...],
                preferred_element_type=jnp.float32) + b3_ref[...]
    h = jnp.maximum(h, 0.0)
    logits = jnp.dot(h.astype(w4_ref.dtype), w4_ref[...],
                     preferred_element_type=jnp.float32) + b4_ref[...]
    out_ref[...] = jax.nn.sigmoid(logits)


def actor_forward(x, params, max_tile_b=MAX_TILE_B):
    """x: (B, state_dim) f32.  params: dict of pre-transposed weights / biases."""
    B, state_dim = x.shape
    hidden = params["w1"].shape[1]
    n_devices = params["w4"].shape[1]

    # ---- lane-dense output: pad last layer's out-dim to a full 128-lane vreg ----
    n_out_pad = _round_up(n_devices, LANE)
    w4 = jnp.zeros((hidden, n_out_pad), jnp.float32).at[:, :n_devices].set(params["w4"])
    b4 = jnp.zeros((1, n_out_pad), jnp.float32).at[:, :n_devices].set(params["b4"])

    # ---- bf16 MXU operands; biases stay f32 ----
    x_bf = x.astype(jnp.bfloat16)
    w1 = params["w1"].astype(jnp.bfloat16)
    w2 = params["w2"].astype(jnp.bfloat16)
    w3 = params["w3"].astype(jnp.bfloat16)
    w4 = w4.astype(jnp.bfloat16)
    b1, b2, b3 = params["b1"], params["b2"], params["b3"]

    # ---- batch grid: large tiles, padded to a tile multiple (no garbage tail) ----
    tile_b = min(max_tile_b, _round_up(B, 8))
    b_pad = _round_up(B, tile_b)
    if b_pad != B:
        x_bf = jnp.pad(x_bf, ((0, b_pad - B), (0, 0)))
    grid = (b_pad // tile_b,)

    def const_spec(shape):
        # Same block index every grid step -> stays VMEM-resident, no re-DMA.
        return pl.BlockSpec(shape, lambda i: tuple(0 for _ in shape))

    out = pl.pallas_call(
        actor_kernel,
        out_shape=jax.ShapeDtypeStruct((b_pad, n_out_pad), jnp.float32),
        grid=grid,
        in_specs=[
            pl.BlockSpec((tile_b, state_dim), lambda i: (i, 0)),   # x tile
            const_spec(w1.shape), const_spec(b1.shape),
            const_spec(w2.shape), const_spec(b2.shape),
            const_spec(w3.shape), const_spec(b3.shape),
            const_spec(w4.shape), const_spec(b4.shape),
        ],
        out_specs=pl.BlockSpec((tile_b, n_out_pad), lambda i: (i, 0)),
        compiler_params=pltpu.CompilerParams(
            dimension_semantics=("parallel",),   # megacore sharding on v7x; no-op on v5e/v6e
        ),
    )(x_bf, w1, b1, w2, b2, w3, b3, w4, b4)

    return out[:B, :n_devices]


def orthogonal(key, shape, gain):
    """Deterministic orthogonal init (matches nn.init.orthogonal_ semantics)."""
    rows, cols = shape
    n = max(rows, cols)
    a = jax.random.normal(key, (n, n), dtype=jnp.float32)
    q, r = jnp.linalg.qr(a)
    d = jnp.diag(r)
    q = q * jnp.where(d >= 0, 1.0, -1.0)     # make decomposition unique
    return gain * q[:rows, :cols]


def make_params(key, state_dim, n_devices, hidden_size=64, gain=2.0):
    # The PyTorch module calls init_weights(layer, 2) -> orthogonal gain 2, zero bias.
    k1, k2, k3, k4 = jax.random.split(key, 4)
    # PyTorch Linear weight is (out, in); we store (in, out) for x @ W.
    return {
        "w1": orthogonal(k1, (state_dim, hidden_size), gain),
        "b1": jnp.zeros((1, hidden_size), jnp.float32),
        "w2": orthogonal(k2, (hidden_size, hidden_size), gain),
        "b2": jnp.zeros((1, hidden_size), jnp.float32),
        "w3": orthogonal(k3, (hidden_size, hidden_size), gain),
        "b3": jnp.zeros((1, hidden_size), jnp.float32),
        "w4": orthogonal(k4, (hidden_size, n_devices), gain),
        "b4": jnp.zeros((1, n_devices), jnp.float32),
    }


def actor_reference_bf16(x, p):
    """Pure-JAX reference with the same bf16-operand / f32-accumulate numerics."""
    def mm(a, w):
        return jnp.dot(a.astype(jnp.bfloat16), w.astype(jnp.bfloat16),
                       preferred_element_type=jnp.float32)
    h = jax.nn.relu(mm(x, p["w1"]) + p["b1"])
    h = jax.nn.relu(mm(h, p["w2"]) + p["b2"])
    h = jax.nn.relu(mm(h, p["w3"]) + p["b3"])
    return jax.nn.sigmoid(mm(h, p["w4"]) + p["b4"])


def actor_reference_f32(x, p):
    h = jax.nn.relu(x @ p["w1"] + p["b1"])
    h = jax.nn.relu(h @ p["w2"] + p["b2"])
    h = jax.nn.relu(h @ p["w3"] + p["b3"])
    return jax.nn.sigmoid(h @ p["w4"] + p["b4"])


if __name__ == "__main__":
    batch, state_dim, n_devices, hidden = 8, 16, 4, 64

    key = jax.random.PRNGKey(0)
    kx, kp = jax.random.split(key)
    x = jax.random.normal(kx, (batch, state_dim), dtype=jnp.float32)
    params = make_params(kp, state_dim, n_devices, hidden)

    probs = actor_forward(x, params)
    probs = jax.block_until_ready(probs)

    ref_bf = actor_reference_bf16(x, params)
    ref_f32 = actor_reference_f32(x, params)

    assert probs.shape == (batch, n_devices)
    assert jnp.allclose(probs, ref_bf, atol=2e-3, rtol=2e-3), "mismatch vs bf16-matched reference"
    assert jnp.allclose(probs, ref_f32, atol=5e-2, rtol=5e-2), "mismatch vs f32 reference"

    print("KERNEL_OK")
</pallas_src>

<mosaic_0001>
module attributes {stable_mosaic.version = 11 : i64} {
  func.func @actor_kernel(%arg0: i32, %arg1: memref<8x16xbf16, #tpu.memory_space<vmem>>, %arg2: memref<16x64xbf16, #tpu.memory_space<vmem>>, %arg3: memref<1x64xf32, #tpu.memory_space<vmem>>, %arg4: memref<64x64xbf16, #tpu.memory_space<vmem>>, %arg5: memref<1x64xf32, #tpu.memory_space<vmem>>, %arg6: memref<64x64xbf16, #tpu.memory_space<vmem>>, %arg7: memref<1x64xf32, #tpu.memory_space<vmem>>, %arg8: memref<64x128xbf16, #tpu.memory_space<vmem>>, %arg9: memref<1x128xf32, #tpu.memory_space<vmem>>, %arg10: memref<8x128xf32, #tpu.memory_space<vmem>>) attributes {dimension_semantics = [#tpu.dimension_semantics<parallel>], iteration_bounds = array<i64: 1>, scalar_prefetch = 0 : i64, scratch_operands = 0 : i64, tpu.core_type = #tpu.core_type<tc>, window_params = [{transform_indices = @transform_0, window_bounds = array<i64: 8, 16>}, {pipeline_mode = #tpu.pipeline_mode<synchronous>, transform_indices = @transform_1, window_bounds = array<i64: 16, 64>}, {pipeline_mode = #tpu.pipeline_mode<synchronous>, transform_indices = @transform_2, window_bounds = array<i64: 1, 64>}, {pipeline_mode = #tpu.pipeline_mode<synchronous>, transform_indices = @transform_3, window_bounds = array<i64: 64, 64>}, {pipeline_mode = #tpu.pipeline_mode<synchronous>, transform_indices = @transform_4, window_bounds = array<i64: 1, 64>}, {pipeline_mode = #tpu.pipeline_mode<synchronous>, transform_indices = @transform_5, window_bounds = array<i64: 64, 64>}, {pipeline_mode = #tpu.pipeline_mode<synchronous>, transform_indices = @transform_6, window_bounds = array<i64: 1, 64>}, {pipeline_mode = #tpu.pipeline_mode<synchronous>, transform_indices = @transform_7, window_bounds = array<i64: 64, 128>}, {pipeline_mode = #tpu.pipeline_mode<synchronous>, transform_indices = @transform_8, window_bounds = array<i64: 1, 128>}, {transform_indices = @transform_9, window_bounds = array<i64: 8, 128>}]} {
    %c0 = arith.constant 0 : index
    %c0_0 = arith.constant 0 : index
    %0 = vector.load %arg1[%c0, %c0_0] : memref<8x16xbf16, #tpu.memory_space<vmem>>, vector<8x16xbf16>
    %c0_1 = arith.constant 0 : index
    %c0_2 = arith.constant 0 : index
    %1 = vector.load %arg2[%c0_1, %c0_2] : memref<16x64xbf16, #tpu.memory_space<vmem>>, vector<16x64xbf16>
    %cst = arith.constant dense<0.000000e+00> : vector<8x64xf32>
    %2 = tpu.matmul %0, %1, %cst {dimension_numbers = #tpu.dot_dimension_numbers<[1], [0], [0], [1], [0, 0, 1, 1], [], []>} : vector<8x16xbf16>, vector<16x64xbf16>, vector<8x64xf32> -> vector<8x64xf32>
    %c0_3 = arith.constant 0 : index
    %c0_4 = arith.constant 0 : index
    %3 = vector.load %arg3[%c0_3, %c0_4] : memref<1x64xf32, #tpu.memory_space<vmem>>, vector<1x64xf32>
    %4 = vector.broadcast %3 : vector<1x64xf32> to vector<8x64xf32>
    %5 = arith.addf %2, %4 : vector<8x64xf32>
    %cst_5 = arith.constant 0.000000e+00 : f32
    %6 = vector.broadcast %cst_5 : f32 to vector<8x64xf32>
    %7 = arith.maximumf %5, %6 : vector<8x64xf32>
    %8 = arith.truncf %7 : vector<8x64xf32> to vector<8x64xbf16>
    %c0_6 = arith.constant 0 : index
    %c0_7 = arith.constant 0 : index
    %9 = vector.load %arg4[%c0_6, %c0_7] : memref<64x64xbf16, #tpu.memory_space<vmem>>, vector<64x64xbf16>
    %cst_8 = arith.constant dense<0.000000e+00> : vector<8x64xf32>
    %10 = tpu.matmul %8, %9, %cst_8 {dimension_numbers = #tpu.dot_dimension_numbers<[1], [0], [0], [1], [0, 0, 1, 1], [], []>} : vector<8x64xbf16>, vector<64x64xbf16>, vector<8x64xf32> -> vector<8x64xf32>
    %c0_9 = arith.constant 0 : index
    %c0_10 = arith.constant 0 : index
    %11 = vector.load %arg5[%c0_9, %c0_10] : memref<1x64xf32, #tpu.memory_space<vmem>>, vector<1x64xf32>
    %12 = vector.broadcast %11 : vector<1x64xf32> to vector<8x64xf32>
    %13 = arith.addf %10, %12 : vector<8x64xf32>
    %cst_11 = arith.constant 0.000000e+00 : f32
    %14 = vector.broadcast %cst_11 : f32 to vector<8x64xf32>
    %15 = arith.maximumf %13, %14 : vector<8x64xf32>
    %16 = arith.truncf %15 : vector<8x64xf32> to vector<8x64xbf16>
    %c0_12 = arith.constant 0 : index
    %c0_13 = arith.constant 0 : index
    %17 = vector.load %arg6[%c0_12, %c0_13] : memref<64x64xbf16, #tpu.memory_space<vmem>>, vector<64x64xbf16>
    %cst_14 = arith.constant dense<0.000000e+00> : vector<8x64xf32>
    %18 = tpu.matmul %16, %17, %cst_14 {dimension_numbers = #tpu.dot_dimension_numbers<[1], [0], [0], [1], [0, 0, 1, 1], [], []>} : vector<8x64xbf16>, vector<64x64xbf16>, vector<8x64xf32> -> vector<8x64xf32>
    %c0_15 = arith.constant 0 : index
    %c0_16 = arith.constant 0 : index
    %19 = vector.load %arg7[%c0_15, %c0_16] : memref<1x64xf32, #tpu.memory_space<vmem>>, vector<1x64xf32>
    %20 = vector.broadcast %19 : vector<1x64xf32> to vector<8x64xf32>
    %21 = arith.addf %18, %20 : vector<8x64xf32>
    %cst_17 = arith.constant 0.000000e+00 : f32
    %22 = vector.broadcast %cst_17 : f32 to vector<8x64xf32>
    %23 = arith.maximumf %21, %22 : vector<8x64xf32>
    %24 = arith.truncf %23 : vector<8x64xf32> to vector<8x64xbf16>
    %c0_18 = arith.constant 0 : index
    %c0_19 = arith.constant 0 : index
    %25 = vector.load %arg8[%c0_18, %c0_19] : memref<64x128xbf16, #tpu.memory_space<vmem>>, vector<64x128xbf16>
    %cst_20 = arith.constant dense<0.000000e+00> : vector<8x128xf32>
    %26 = tpu.matmul %24, %25, %cst_20 {dimension_numbers = #tpu.dot_dimension_numbers<[1], [0], [0], [1], [0, 0, 1, 1], [], []>} : vector<8x64xbf16>, vector<64x128xbf16>, vector<8x128xf32> -> vector<8x128xf32>
    %c0_21 = arith.constant 0 : index
    %c0_22 = arith.constant 0 : index
    %27 = vector.load %arg9[%c0_21, %c0_22] : memref<1x128xf32, #tpu.memory_space<vmem>>, vector<1x128xf32>
    %28 = vector.broadcast %27 : vector<1x128xf32> to vector<8x128xf32>
    %29 = arith.addf %26, %28 : vector<8x128xf32>
    %30 = arith.negf %29 : vector<8x128xf32>
    %31 = math.exp %30 : vector<8x128xf32>
    %cst_23 = arith.constant 1.000000e+00 : f32
    %32 = vector.broadcast %cst_23 : f32 to vector<8x128xf32>
    %33 = arith.addf %32, %31 : vector<8x128xf32>
    %34 = arith.divf %32, %33 : vector<8x128xf32>
    %c0_24 = arith.constant 0 : index
    %c0_25 = arith.constant 0 : index
    %35 = vector.load %arg10[%c0_24, %c0_25] : memref<8x128xf32, #tpu.memory_space<vmem>>, vector<8x128xf32>
    tpu.vector_store %arg10[%c0_24, %c0_25], %34 {strides = array<i32>} : memref<8x128xf32, #tpu.memory_space<vmem>>, vector<8x128xf32>,
    return
  }
  func.func @transform_0(%arg0: i32) -> (i32, i32) {
    %c0_i32 = arith.constant 0 : i32
    %c0_i32_0 = arith.constant 0 : i32
    return %arg0, %c0_i32 : i32, i32
  }
  func.func @transform_1(%arg0: i32) -> (i32, i32) {
    %c0_i32 = arith.constant 0 : i32
    %c0_i32_0 = arith.constant 0 : i32
    %c0_i32_1 = arith.constant 0 : i32
    return %c0_i32, %c0_i32_0 : i32, i32
  }
  func.func @transform_2(%arg0: i32) -> (i32, i32) {
    %c0_i32 = arith.constant 0 : i32
    %c0_i32_0 = arith.constant 0 : i32
    %c0_i32_1 = arith.constant 0 : i32
    return %c0_i32, %c0_i32_0 : i32, i32
  }
  func.func @transform_3(%arg0: i32) -> (i32, i32) {
    %c0_i32 = arith.constant 0 : i32
    %c0_i32_0 = arith.constant 0 : i32
    %c0_i32_1 = arith.constant 0 : i32
    return %c0_i32, %c0_i32_0 : i32, i32
  }
  func.func @transform_4(%arg0: i32) -> (i32, i32) {
    %c0_i32 = arith.constant 0 : i32
    %c0_i32_0 = arith.constant 0 : i32
    %c0_i32_1 = arith.constant 0 : i32
    return %c0_i32, %c0_i32_0 : i32, i32
  }
  func.func @transform_5(%arg0: i32) -> (i32, i32) {
    %c0_i32 = arith.constant 0 : i32
    %c0_i32_0 = arith.constant 0 : i32
    %c0_i32_1 = arith.constant 0 : i32
    return %c0_i32, %c0_i32_0 : i32, i32
  }
  func.func @transform_6(%arg0: i32) -> (i32, i32) {
    %c0_i32 = arith.constant 0 : i32
    %c0_i32_0 = arith.constant 0 : i32
    %c0_i32_1 = arith.constant 0 : i32
    return %c0_i32, %c0_i32_0 : i32, i32
  }
  func.func @transform_7(%arg0: i32) -> (i32, i32) {
    %c0_i32 = arith.constant 0 : i32
    %c0_i32_0 = arith.constant 0 : i32
    %c0_i32_1 = arith.constant 0 : i32
    return %c0_i32, %c0_i32_0 : i32, i32
  }
  func.func @transform_8(%arg0: i32) -> (i32, i32) {
    %c0_i32 = arith.constant 0 : i32
    %c0_i32_0 = arith.constant 0 : i32
    %c0_i32_1 = arith.constant 0 : i32
    return %c0_i32, %c0_i32_0 : i32, i32
  }
  func.func @transform_9(%arg0: i32) -> (i32, i32) {
    %c0_i32 = arith.constant 0 : i32
    %c0_i32_0 = arith.constant 0 : i32
    return %arg0, %c0_i32 : i32, i32
  }
}

</mosaic_0001>

<llo_original>
// kernel: tpu_custom_call.1
$region0: #{tpu_custom_call.1}
  #allocation0 [shape = 'u32[]', space=smem, size = 0x4, offset = 0x4, fixed_abs, tag = 'smem constant byte address 0x4 - core index']
  #allocation1 [shape = 'u32[144,128]{1,0:T(1,128)}', space=vmem, size = 0x12000, scoped, tag = 'internal scratch']
  %s0 = inlined_call_operand.hbm [shape: bf16[8,16], index: 0, kind: input, shape index: {}]
  %s1 = inlined_call_operand.hbm [shape: bf16[16,64], index: 1, kind: input, shape index: {}]
  %s2 = inlined_call_operand.vmem [shape: f32[1,64], index: 2, kind: input, shape index: {}]
  %s3 = inlined_call_operand.hbm [shape: bf16[64,64], index: 3, kind: input, shape index: {}]
  %s4 = inlined_call_operand.vmem [shape: f32[1,64], index: 4, kind: input, shape index: {}]
  %s5 = inlined_call_operand.hbm [shape: bf16[64,64], index: 5, kind: input, shape index: {}]
  %s6 = inlined_call_operand.vmem [shape: f32[1,64], index: 6, kind: input, shape index: {}]
  %s7 = inlined_call_operand.hbm [shape: bf16[64,128], index: 7, kind: input, shape index: {}]
  %s8 = inlined_call_operand.vmem [shape: f32[1,128], index: 8, kind: input, shape index: {}]
  %s9 = inlined_call_operand.hbm [shape: f32[8,128], index: 9, kind: output, shape index: {}]
  %s10 = sld [smem:[#allocation0]]
  $region66: #{tpu_custom_call.1} parent=0
    _
  %s12 = ssub.s32 1, %s10
  %s13 = scalar_select 0, %s12, %s10
  $region1: #{tpu_custom_call.1} parent=0
    #allocation2 [shape = 'u8[2048]{0}', space=vmem, size = 0x800, scoped, tag = 'input window, operand 0, single buffered']
    #allocation3 [shape = 's32[1]{0}', space=sflag, size = 0x4, scoped, tag = 'scoped memory for tpu_custom_call.1']
    #allocation4 [shape = 's32[1]{0}', space=sflag, size = 0x4, scoped, tag = 'scoped memory for tpu_custom_call.1']
    #allocation5 [shape = 'u8[4096]{0}', space=vmem, size = 0x1000, scoped, tag = 'input window, operand 1, single buffered']
    #allocation6 [shape = 's32[1]{0}', space=sflag, size = 0x4, scoped, tag = 'scoped memory for tpu_custom_call.1']
    #allocation7 [shape = 'u8[16384]{0}', space=vmem, size = 0x4000, scoped, tag = 'input window, operand 3, single buffered']
    #allocation8 [shape = 'u8[16384]{0}', space=vmem, size = 0x4000, scoped, tag = 'input window, operand 5, single buffered']
    #allocation9 [shape = 's32[1]{0}', space=sflag, size = 0x4, scoped, tag = 'scoped memory for tpu_custom_call.1']
    #allocation10 [shape = 'u8[16384]{0}', space=vmem, size = 0x4000, scoped, tag = 'input window, operand 7, single buffered']
    #allocation11 [shape = 'u8[4096]{0}', space=vmem, size = 0x1000, scoped, tag = 'output window, operand 0, single buffered']
    %14 = vsyncpa [#allocation3], 0
    %15 = vsyncpa [#allocation6], 0
    %16 = vsyncpa [#allocation9], 0
    %17 = vsyncpa [#allocation4], 0
    // Predicated region
    $region2: #{tpu_custom_call.1} parent=1 // pred_check
      _
    $region3: #{tpu_custom_call.1} parent=1 // pred_check_branch
      %19 = sbr.rel (0) target = $region5
    $region4: #{tpu_custom_call.1} parent=1 // pred_region
      %s21 = ssub.s32 64, 64
      %22 = vsyncadd [#allocation3], %s21
      %s24 = sshll.u32 [#allocation2], 4
      %s25 = int_to_ptr.vmem [resolvable:$true] %s24
      %27 = dma.hbm_to_vmem [thread:$0]  %s0, 64, %s25, [#allocation3]
    $region5: #{tpu_custom_call.1} parent=1 // pred_fallthru
      _
    // Predicated region
    $region6: #{tpu_custom_call.1} parent=1 // pred_check
      _
    $region7: #{tpu_custom_call.1} parent=1 // pred_check_branch
      %29 = sbr.rel (0) target = $region9
    $region8: #{tpu_custom_call.1} parent=1 // pred_region
      %s31 = ssub.s32 128, 128
      %32 = vsyncadd [#allocation6], %s31
      %s33 = sshll.u32 [#allocation5], 4
      %s34 = int_to_ptr.vmem [resolvable:$true] %s33
      %39 = dma.hbm_to_vmem [thread:$0]  %s1, 128, %s34, [#allocation6], 64, 64, 4
    $region9: #{tpu_custom_call.1} parent=1 // pred_fallthru
      _
    // Predicated region
    $region10: #{tpu_custom_call.1} parent=1 // pred_check
      _
    $region11: #{tpu_custom_call.1} parent=1 // pred_check_branch
      %41 = sbr.rel (0) target = $region13
    $region12: #{tpu_custom_call.1} parent=1 // pred_region
      _
    $region13: #{tpu_custom_call.1} parent=1 // pred_fallthru
      _
    // Predicated region
    $region14: #{tpu_custom_call.1} parent=1 // pred_check
      _
    $region15: #{tpu_custom_call.1} parent=1 // pred_check_branch
      %43 = sbr.rel (0) target = $region17
    $region16: #{tpu_custom_call.1} parent=1 // pred_region
      %s45 = ssub.s32 512, 512
      %46 = vsyncadd [#allocation6], %s45
      %s47 = sshll.u32 [#allocation7], 4
      %s48 = int_to_ptr.vmem [resolvable:$true] %s47
      %53 = dma.hbm_to_vmem [thread:$0]  %s3, 512, %s48, [#allocation6], 64, 64, 4
    $region17: #{tpu_custom_call.1} parent=1 // pred_fallthru
      _
    // Predicated region
    $region18: #{tpu_custom_call.1} parent=1 // pred_check
      _
    $region19: #{tpu_custom_call.1} parent=1 // pred_check_branch
      %55 = sbr.rel (0) target = $region21
    $region20: #{tpu_custom_call.1} parent=1 // pred_region
      _
    $region21: #{tpu_custom_call.1} parent=1 // pred_fallthru
      _
    // Predicated region
    $region22: #{tpu_custom_call.1} parent=1 // pred_check
      _
    $region23: #{tpu_custom_call.1} parent=1 // pred_check_branch
      %57 = sbr.rel (0) target = $region25
    $region24: #{tpu_custom_call.1} parent=1 // pred_region
      %s59 = ssub.s32 512, 512
      %60 = vsyncadd [#allocation9], %s59
      %s61 = sshll.u32 [#allocation8], 4
      %s62 = int_to_ptr.vmem [resolvable:$true] %s61
      %67 = dma.hbm_to_vmem [thread:$0]  %s5, 512, %s62, [#allocation9], 64, 64, 4
    $region25: #{tpu_custom_call.1} parent=1 // pred_fallthru
      _
    // Predicated region
    $region26: #{tpu_custom_call.1} parent=1 // pred_check
      _
    $region27: #{tpu_custom_call.1} parent=1 // pred_check_branch
      %69 = sbr.rel (0) target = $region29
    $region28: #{tpu_custom_call.1} parent=1 // pred_region
      _
    $region29: #{tpu_custom_call.1} parent=1 // pred_fallthru
      _
    // Predicated region
    $region30: #{tpu_custom_call.1} parent=1 // pred_check
      _
    $region31: #{tpu_custom_call.1} parent=1 // pred_check_branch
      %71 = sbr.rel (0) target = $region33
    $region32: #{tpu_custom_call.1} parent=1 // pred_region
      %s73 = ssub.s32 512, 512
      %74 = vsyncadd [#allocation9], %s73
      %s75 = sshll.u32 [#allocation10], 4
      %s76 = int_to_ptr.vmem [resolvable:$true] %s75
      %81 = dma.hbm_to_vmem [thread:$0]  %s7, 512, %s76, [#allocation9], 64, 64, 4
    $region33: #{tpu_custom_call.1} parent=1 // pred_fallthru
      _
    // Predicated region
    $region34: #{tpu_custom_call.1} parent=1 // pred_check
      _
    $region35: #{tpu_custom_call.1} parent=1 // pred_check_branch
      %83 = sbr.rel (0) target = $region37
    $region36: #{tpu_custom_call.1} parent=1 // pred_region
      _
    $region37: #{tpu_custom_call.1} parent=1 // pred_fallthru
      _
    // Predicated region
    $region38: #{tpu_custom_call.1} parent=1 // pred_check
      _
    $region39: #{tpu_custom_call.1} parent=1 // pred_check_branch
      %85 = sbr.rel (0) target = $region41
    $region40: #{tpu_custom_call.1} parent=1 // pred_region
      %86 = dma.done [#allocation3], 64
    $region41: #{tpu_custom_call.1} parent=1 // pred_fallthru
      _
    // Predicated region
    $region42: #{tpu_custom_call.1} parent=1 // pred_check
      _
    $region43: #{tpu_custom_call.1} parent=1 // pred_check_branch
      %88 = sbr.rel (0) target = $region45
    $region44: #{tpu_custom_call.1} parent=1 // pred_region
      %89 = dma.done [#allocation6], 128
    $region45: #{tpu_custom_call.1} parent=1 // pred_fallthru
      _
    // Predicated region
    $region46: #{tpu_custom_call.1} parent=1 // pred_check
      _
    $region47: #{tpu_custom_call.1} parent=1 // pred_check_branch
      %91 = sbr.rel (0) target = $region49
    $region48: #{tpu_custom_call.1} parent=1 // pred_region
      %92 = dma.done [#allocation6], 512
    $region49: #{tpu_custom_call.1} parent=1 // pred_fallthru
      _
    // Predicated region
    $region50: #{tpu_custom_call.1} parent=1 // pred_check
      _
    $region51: #{tpu_custom_call.1} parent=1 // pred_check_branch
      %94 = sbr.rel (0) target = $region53
    $region52: #{tpu_custom_call.1} parent=1 // pred_region
      %95 = dma.done [#allocation9], 512
    $region53: #{tpu_custom_call.1} parent=1 // pred_fallthru
      _
    // Predicated region
    $region54: #{tpu_custom_call.1} parent=1 // pred_check
      _
    $region55: #{tpu_custom_call.1} parent=1 // pred_check_branch
      %97 = sbr.rel (0) target = $region57
    $region56: #{tpu_custom_call.1} parent=1 // pred_region
      %98 = dma.done [#allocation9], 512
    $region57: #{tpu_custom_call.1} parent=1 // pred_fallthru
      _
    %v100 = vld [vmem:[#allocation2] sm:$0xf]
    %v101 = vld [vmem:[#allocation5] sm:$0xf]
    %v102 = vld [vmem:[#allocation5 + $0x4] sm:$0xf]
    %v103 = vld [vmem:[%s2] sm:$0x1]
    %v105 = vlaneseq
    %v106 = vshrl.u32 %v105, 7
    %v107 = vsub.s32 0, %v106
    %v108 = vrot.slane %v103, %v107
    %v112 = vunpack.c.l.b16 %v101
    %v113 = vunpack.c.l.b16 %v102
    %v114 = vpack.c.b16 %v113, %v112
    %vm116 = vcmask 130048
    %v118 = vsel %vm116, %v100, 0
    %120 = vmatprep.subr.bf16.mxu0 0
    %121 = vmatpush1.bf16.msra.mxu0 0
    %122 = vmatprep.subr.bf16.mxu0 0
    %123 = vmatpush1.bf16.msra.mxu0 0
    %124 = vmatprep.subr.bf16.mxu0 0
    %125 = vmatpush1.bf16.msra.mxu0 0
    %126 = vmatprep.subr.bf16.mxu0 0
    %127 = vmatpush1.bf16.msra.mxu0 0
    %128 = vmatprep.subr.bf16.mxu0 0
    %129 = vmatpush1.bf16.msra.mxu0 0
    %130 = vmatprep.subr.bf16.mxu0 0
    %131 = vmatpush1.bf16.msra.mxu0 0
    %132 = vmatprep.subr.bf16.mxu0 0
    %133 = vmatpush1.bf16.msra.mxu0 0
    %134 = vmatprep.subr.bf16.mxu0 0
    %135 = vmatpush1.bf16.msra.mxu0 %v114
    %136 = vmatprep.subr.bf16.mxu0 0
    %137 = vmatpush2.bf16.msra.mxu0 0
    %138 = vmatprep.subr.bf16.mxu0 0
    %139 = vmatpush2.bf16.msra.mxu0 0
    %140 = vmatprep.subr.bf16.mxu0 0
    %141 = vmatpush2.bf16.msra.mxu0 0
    %142 = vmatprep.subr.bf16.mxu0 0
    %143 = vmatpush2.bf16.msra.mxu0 0
    %144 = vmatprep.subr.bf16.mxu0 0
    %145 = vmatpush2.bf16.msra.mxu0 0
    %146 = vmatprep.subr.bf16.mxu0 0
    %147 = vmatpush2.bf16.msra.mxu0 0
    %148 = vmatprep.subr.bf16.mxu0 0
    %149 = vmatpush2.bf16.msra.mxu0 0
    %150 = vmatprep.subr.bf16.mxu0 0
    %151 = vmatpush2.bf16.msra.mxu0 0
    %152 = vmatprep.mubr.bf16.mxu0 0
    %153 = vmatmul.mubr.bf16.gmra.mxu0 %v118
    %v154 = vpop.f32.mrf.mxu0
    %v155 = vadd.f32 %v108, %v154
    %v156 = vpop.f32.mrf.mxu0
    %v157 = vpop.f32.mrf.mxu0
    %v158 = vpop.f32.mrf.mxu0
    %159 = vdwg.mxu0
    %v160 = vmax.f32 %v155, 0.0
    %v161 = vpack.c.bf16 %v160, %v160
    %v162 = vld [vmem:[#allocation7] sm:$0xf]
    %v163 = vld [vmem:[#allocation7 + $0x4] sm:$0xf]
    %v164 = vld [vmem:[#allocation7 + $0x8] sm:$0xf]
    %v165 = vld [vmem:[#allocation7 + $0xc] sm:$0xf]
    %v166 = vld [vmem:[#allocation7 + $0x10] sm:$0xf]
    %v167 = vld [vmem:[#allocation7 + $0x14] sm:$0xf]
    %v168 = vld [vmem:[#allocation7 + $0x18] sm:$0xf]
    %v169 = vld [vmem:[#allocation7 + $0x1c] sm:$0xf]
    %v170 = vld [vmem:[%s4] sm:$0x1]
    %v172 = vlaneseq
    %v173 = vshrl.u32 %v172, 7
    %v174 = vsub.s32 0, %v173
    %v175 = vrot.slane %v170, %v174
    %v185 = vunpack.c.l.b16 %v162
    %v186 = vunpack.c.l.b16 %v163
    %v187 = vunpack.c.l.b16 %v164
    %v188 = vunpack.c.l.b16 %v165
    %v189 = vunpack.c.l.b16 %v166
    %v190 = vunpack.c.l.b16 %v167
    %v191 = vunpack.c.l.b16 %v168
    %v192 = vunpack.c.l.b16 %v169
    %v193 = vpack.c.b16 %v186, %v185
    %v194 = vpack.c.b16 %v188, %v187
    %v195 = vpack.c.b16 %v190, %v189
    %v196 = vpack.c.b16 %v192, %v191
    %vm201 = vcmask 523264
    %v203 = vsel %vm201, %v161, 0
    %205 = vmatprep.subr.bf16.mxu0 0
    %206 = vmatpush1.bf16.msra.mxu0 0
    %207 = vmatprep.subr.bf16.mxu0 0
    %208 = vmatpush1.bf16.msra.mxu0 0
    %209 = vmatprep.subr.bf16.mxu0 0
    %210 = vmatpush1.bf16.msra.mxu0 0
    %211 = vmatprep.subr.bf16.mxu0 0
    %212 = vmatpush1.bf16.msra.mxu0 0
    %213 = vmatprep.subr.bf16.mxu0 0
    %214 = vmatpush1.bf16.msra.mxu0 %v196
    %215 = vmatprep.subr.bf16.mxu0 0
    %216 = vmatpush1.bf16.msra.mxu0 %v195
    %217 = vmatprep.subr.bf16.mxu0 0
    %218 = vmatpush1.bf16.msra.mxu0 %v194
    %219 = vmatprep.subr.bf16.mxu0 0
    %220 = vmatpush1.bf16.msra.mxu0 %v193
    %221 = vmatprep.subr.bf16.mxu0 0
    %222 = vmatpush2.bf16.msra.mxu0 0
    %223 = vmatprep.subr.bf16.mxu0 0
    %224 = vmatpush2.bf16.msra.mxu0 0
    %225 = vmatprep.subr.bf16.mxu0 0
    %226 = vmatpush2.bf16.msra.mxu0 0
    %227 = vmatprep.subr.bf16.mxu0 0
    %228 = vmatpush2.bf16.msra.mxu0 0
    %229 = vmatprep.subr.bf16.mxu0 0
    %230 = vmatpush2.bf16.msra.mxu0 0
    %231 = vmatprep.subr.bf16.mxu0 0
    %232 = vmatpush2.bf16.msra.mxu0 0
    %233 = vmatprep.subr.bf16.mxu0 0
    %234 = vmatpush2.bf16.msra.mxu0 0
    %235 = vmatprep.subr.bf16.mxu0 0
    %236 = vmatpush2.bf16.msra.mxu0 0
    %237 = vmatprep.mubr.bf16.mxu0 0
    %238 = vmatmul.mubr.bf16.gmra.mxu0 %v203
    %v239 = vpop.f32.mrf.mxu0
    %v240 = vadd.f32 %v175, %v239
    %v241 = vpop.f32.mrf.mxu0
    %v242 = vpop.f32.mrf.mxu0
    %v243 = vpop.f32.mrf.mxu0
    %244 = vdwg.mxu0
    %v245 = vmax.f32 %v240, 0.0
    %v246 = vpack.c.bf16 %v245, %v245
    %v247 = vld [vmem:[#allocation8] sm:$0xf]
    %v248 = vld [vmem:[#allocation8 + $0x4] sm:$0xf]
    %v249 = vld [vmem:[#allocation8 + $0x8] sm:$0xf]
    %v250 = vld [vmem:[#allocation8 + $0xc] sm:$0xf]
    %v251 = vld [vmem:[#allocation8 + $0x10] sm:$0xf]
    %v252 = vld [vmem:[#allocation8 + $0x14] sm:$0xf]
    %v253 = vld [vmem:[#allocation8 + $0x18] sm:$0xf]
    %v254 = vld [vmem:[#allocation8 + $0x1c] sm:$0xf]
    %v255 = vld [vmem:[%s6] sm:$0x1]
    %v257 = vlaneseq
    %v258 = vshrl.u32 %v257, 7
    %v259 = vsub.s32 0, %v258
    %v260 = vrot.slane %v255, %v259
    %v270 = vunpack.c.l.b16 %v247
    %v271 = vunpack.c.l.b16 %v248
    %v272 = vunpack.c.l.b16 %v249
    %v273 = vunpack.c.l.b16 %v250
    %v274 = vunpack.c.l.b16 %v251
    %v275 = vunpack.c.l.b16 %v252
    %v276 = vunpack.c.l.b16 %v253
    %v277 = vunpack.c.l.b16 %v254
    %v278 = vpack.c.b16 %v271, %v270
    %v279 = vpack.c.b16 %v273, %v272
    %v280 = vpack.c.b16 %v275, %v274
    %v281 = vpack.c.b16 %v277, %v276
    %v287 = vsel %vm201, %v246, 0
    %289 = vmatprep.subr.bf16.mxu0 0
    %290 = vmatpush1.bf16.msra.mxu0 0
    %291 = vmatprep.subr.bf16.mxu0 0
    %292 = vmatpush1.bf16.msra.mxu0 0
    %293 = vmatprep.subr.bf16.mxu0 0
    %294 = vmatpush1.bf16.msra.mxu0 0
    %295 = vmatprep.subr.bf16.mxu0 0
    %296 = vmatpush1.bf16.msra.mxu0 0
    %297 = vmatprep.subr.bf16.mxu0 0
    %298 = vmatpush1.bf16.msra.mxu0 %v281
    %299 = vmatprep.subr.bf16.mxu0 0
    %300 = vmatpush1.bf16.msra.mxu0 %v280
    %301 = vmatprep.subr.bf16.mxu0 0
    %302 = vmatpush1.bf16.msra.mxu0 %v279
    %303 = vmatprep.subr.bf16.mxu0 0
    %304 = vmatpush1.bf16.msra.mxu0 %v278
    %305 = vmatprep.subr.bf16.mxu0 0
    %306 = vmatpush2.bf16.msra.mxu0 0
    %307 = vmatprep.subr.bf16.mxu0 0
    %308 = vmatpush2.bf16.msra.mxu0 0
    %309 = vmatprep.subr.bf16.mxu0 0
    %310 = vmatpush2.bf16.msra.mxu0 0
    %311 = vmatprep.subr.bf16.mxu0 0
    %312 = vmatpush2.bf16.msra.mxu0 0
    %313 = vmatprep.subr.bf16.mxu0 0
    %314 = vmatpush2.bf16.msra.mxu0 0
    %315 = vmatprep.subr.bf16.mxu0 0
    %316 = vmatpush2.bf16.msra.mxu0 0
    %317 = vmatprep.subr.bf16.mxu0 0
    %318 = vmatpush2.bf16.msra.mxu0 0
    %319 = vmatprep.subr.bf16.mxu0 0
    %320 = vmatpush2.bf16.msra.mxu0 0
    %321 = vmatprep.mubr.bf16.mxu0 0
    %322 = vmatmul.mubr.bf16.gmra.mxu0 %v287
    %v323 = vpop.f32.mrf.mxu0
    %v324 = vadd.f32 %v260, %v323
    %v325 = vpop.f32.mrf.mxu0
    %v326 = vpop.f32.mrf.mxu0
    %v327 = vpop.f32.mrf.mxu0
    %328 = vdwg.mxu0
    %v329 = vmax.f32 %v324, 0.0
    %v330 = vpack.c.bf16 %v329, %v329
    %v331 = vld [vmem:[#allocation10] sm:$0xf]
    %v332 = vld [vmem:[#allocation10 + $0x4] sm:$0xf]
    %v333 = vld [vmem:[#allocation10 + $0x8] sm:$0xf]
    %v334 = vld [vmem:[#allocation10 + $0xc] sm:$0xf]
    %v335 = vld [vmem:[#allocation10 + $0x10] sm:$0xf]
    %v336 = vld [vmem:[#allocation10 + $0x14] sm:$0xf]
    %v337 = vld [vmem:[#allocation10 + $0x18] sm:$0xf]
    %v338 = vld [vmem:[#allocation10 + $0x1c] sm:$0xf]
    %v339 = vld [vmem:[%s8] sm:$0x1]
    %v341 = vlaneseq
    %v342 = vshrl.u32 %v341, 7
    %v343 = vsub.s32 0, %v342
    %v344 = vrot.slane %v339, %v343
    %v354 = vunpack.c.l.b16 %v331
    %v355 = vunpack.c.l.b16 %v332
    %v356 = vunpack.c.l.b16 %v333
    %v357 = vunpack.c.l.b16 %v334
    %v358 = vunpack.c.l.b16 %v335
    %v359 = vunpack.c.l.b16 %v336
    %v360 = vunpack.c.l.b16 %v337
    %v361 = vunpack.c.l.b16 %v338
    %v362 = vpack.c.b16 %v355, %v354
    %v363 = vpack.c.b16 %v357, %v356
    %v364 = vpack.c.b16 %v359, %v358
    %v365 = vpack.c.b16 %v361, %v360
    %v371 = vsel %vm201, %v330, 0
    %373 = vmatprep.subr.bf16.mxu0 0
    %374 = vmatpush1.bf16.msra.mxu0 0
    %375 = vmatprep.subr.bf16.mxu0 0
    %376 = vmatpush1.bf16.msra.mxu0 0
    %377 = vmatprep.subr.bf16.mxu0 0
    %378 = vmatpush1.bf16.msra.mxu0 0
    %379 = vmatprep.subr.bf16.mxu0 0
    %380 = vmatpush1.bf16.msra.mxu0 0
    %381 = vmatprep.subr.bf16.mxu0 0
    %382 = vmatpush1.bf16.msra.mxu0 %v365
    %383 = vmatprep.subr.bf16.mxu0 0
    %384 = vmatpush1.bf16.msra.mxu0 %v364
    %385 = vmatprep.subr.bf16.mxu0 0
    %386 = vmatpush1.bf16.msra.mxu0 %v363
    %387 = vmatprep.subr.bf16.mxu0 0
    %388 = vmatpush1.bf16.msra.mxu0 %v362
    %389 = vmatprep.subr.bf16.mxu0 0
    %390 = vmatpush2.bf16.msra.mxu0 0
    %391 = vmatprep.subr.bf16.mxu0 0
    %392 = vmatpush2.bf16.msra.mxu0 0
    %393 = vmatprep.subr.bf16.mxu0 0
    %394 = vmatpush2.bf16.msra.mxu0 0
    %395 = vmatprep.subr.bf16.mxu0 0
    %396 = vmatpush2.bf16.msra.mxu0 0
    %397 = vmatprep.subr.bf16.mxu0 0
    %398 = vmatpush2.bf16.msra.mxu0 0
    %399 = vmatprep.subr.bf16.mxu0 0
    %400 = vmatpush2.bf16.msra.mxu0 0
    %401 = vmatprep.subr.bf16.mxu0 0
    %402 = vmatpush2.bf16.msra.mxu0 0
    %403 = vmatprep.subr.bf16.mxu0 0
    %404 = vmatpush2.bf16.msra.mxu0 0
    %405 = vmatprep.mubr.bf16.mxu0 0
    %406 = vmatmul.mubr.bf16.gmra.mxu0 %v371
    %v407 = vpop.f32.mrf.mxu0
    %v408 = vadd.f32 %v344, %v407
    %v409 = vpop.f32.mrf.mxu0
    %v410 = vpop.f32.mrf.mxu0
    %v411 = vpop.f32.mrf.mxu0
    %412 = vdwg.mxu0
    %v413 = vxor.u32 %v408, 2147483648
    %v414 = vmul.f32 %v413, 1.442695
    %v415 = vpow.pop %v414
    %v416 = vadd.f32 %v415, 1.0
    %v417 = vrcp.pop %v416
    %v418 = vmul.f32 1.0, %v417
    %419 = vst [vmem:[#allocation11] sm:$0xff] %v418
    // Predicated region
    $region58: #{tpu_custom_call.1} parent=1 // pred_check
      _
    $region59: #{tpu_custom_call.1} parent=1 // pred_check_branch
      %421 = sbr.rel (0) target = $region61
    $region60: #{tpu_custom_call.1} parent=1 // pred_region
      %s423 = ssub.s32 128, 128
      %424 = vsyncadd [#allocation4], %s423
      %s426 = sshll.u32 [#allocation11], 4
      %s427 = int_to_ptr.vmem [resolvable:$true] %s426
      %429 = dma.vmem_to_hbm [thread:$0]  %s427, 128, %s9, [#allocation4]
    $region61: #{tpu_custom_call.1} parent=1 // pred_fallthru
      _
    // Predicated region
    $region62: #{tpu_custom_call.1} parent=1 // pred_check
      _
    $region63: #{tpu_custom_call.1} parent=1 // pred_check_branch
      %431 = sbr.rel (0) target = $region65
    $region64: #{tpu_custom_call.1} parent=1 // pred_region
      %432 = dma.done [#allocation4], 128
    $region65: #{tpu_custom_call.1} parent=1 // pred_fallthru
      _
    %433 = vsyncpa [#allocation3], 1
    %434 = vsyncpa [#allocation6], 1
    %435 = vsyncpa [#allocation9], 1
    %436 = vsyncpa [#allocation4], 1

</llo_original>
